<compile_context>
chip_gen: v7x
topology: tpu7x:2x2x1
jax: 0.10.0
libtpu: 0.0.40
codegen_flags: <defaults>
</compile_context>

<pallas_src>
import functools
import math

import jax
import jax.numpy as jnp
from jax import lax
from jax.experimental import pallas as pl
from jax.experimental.pallas import tpu as pltpu

_TARGET_BLOCK_BYTES = 8 << 20      # ~8 MiB per input block (review: 4-8 MiB)
_VMEM_LIMIT_BYTES = 48 << 20       # explicit scoped-VMEM limit, fits all gens


def _ceil_div(a, b):
    return -(-a // b)


def _round_up(a, m):
    return _ceil_div(a, m) * m


def _tensorcores_per_chip():
    """2 for v7x-style chips (parallel grid axes shard across TCs), else 1."""
    try:
        kind = jax.devices()[0].device_kind.lower().replace(" ", "")
    except Exception:
        return 1
    return 2 if ("v7" in kind or "tpu7" in kind) else 1


def _sublane_multiple(dtype):
    # (8,128) tile for 4-byte dtypes, (16,128) for bf16, (32,128) for int8/fp8.
    return max(8, 32 // jnp.dtype(dtype).itemsize)


def _compiler_params(semantics):
    return pltpu.CompilerParams(dimension_semantics=semantics,
                                vmem_limit_bytes=_VMEM_LIMIT_BYTES)


# --------------------------------------------------------------------------- #
# channels_first: (tile_b, C, tile_hw), reduce over C (sublanes), HW on lanes.
# --------------------------------------------------------------------------- #
def _ln_channels_first_kernel(x_ref, w_ref, b_ref, o_ref, *, eps):
    # x_ref: (tile_b, C, tile_hw); w_ref / b_ref: (C, 1) float32.
    x = x_ref[...].astype(jnp.float32)
    mean = jnp.mean(x, axis=1, keepdims=True)           # (tile_b, 1, tile_hw)
    xc = x - mean
    var = jnp.mean(xc * xc, axis=1, keepdims=True)      # biased, as in module
    inv = lax.rsqrt(var + eps)
    y = xc * inv * w_ref[...][None] + b_ref[...][None]
    o_ref[...] = y.astype(o_ref.dtype)


def _cf_tiles(b, c, hw, elem, num_tc):
    slab = c * hw * elem                                 # one (1, C, HW) slab
    if slab > _TARGET_BLOCK_BYTES and hw > 128:
        # Tile the spatial axis; keep it a multiple of 128 so stores stay
        # lane-dense.  Ragged tails are handled by the cdiv grid.
        tile_hw = min(hw, max(128, (_TARGET_BLOCK_BYTES // (c * elem)) // 128 * 128))
        tile_b = 1
    else:
        # Small per-batch slab (e.g. C=768, hw=7*7): fold batch entries into
        # one block so per-grid-step overhead does not dominate.
        # NOTE: hw < 128 still gives lane-masked stores; accepted here since
        # batch folding already amortises the step cost.
        tile_hw = hw
        tile_b = max(1, min(b, _TARGET_BLOCK_BYTES // max(1, slab)))
    # v7x (2 TCs): make sure there are >= 2 "parallel" grid steps.
    if num_tc >= 2 and _ceil_div(b, tile_b) * _ceil_div(hw, tile_hw) < 2:
        if b >= 2:
            tile_b = _ceil_div(b, 2)
        elif hw >= 256:
            tile_hw = max(128, _round_up(_ceil_div(hw, 2), 128))
    return tile_b, tile_hw


def _layer_norm_channels_first(x, weight, bias, eps):
    b, c = x.shape[0], x.shape[1]
    hw = math.prod(x.shape[2:])
    x3 = x.reshape(b, c, hw)                             # free reshape, no transpose
    elem = jnp.dtype(x.dtype).itemsize
    tile_b, tile_hw = _cf_tiles(b, c, hw, elem, _tensorcores_per_chip())
    out = pl.pallas_call(
        functools.partial(_ln_channels_first_kernel, eps=eps),
        out_shape=jax.ShapeDtypeStruct((b, c, hw), x.dtype),
        grid=(_ceil_div(b, tile_b), _ceil_div(hw, tile_hw)),
        in_specs=[
            pl.BlockSpec((tile_b, c, tile_hw), lambda i, j: (i, 0, j)),
            pl.BlockSpec((c, 1), lambda i, j: (0, 0)),   # resident across grid
            pl.BlockSpec((c, 1), lambda i, j: (0, 0)),
        ],
        out_specs=pl.BlockSpec((tile_b, c, tile_hw), lambda i, j: (i, 0, j)),
        compiler_params=_compiler_params(("parallel", "parallel")),
    )(x3, weight.reshape(c, 1), bias.reshape(c, 1))
    return out.reshape(x.shape)


# --------------------------------------------------------------------------- #
# channels_last, generic: rows of (tile_rows, C), reduce over the last axis.
# --------------------------------------------------------------------------- #
def _ln_rows_kernel(x_ref, w_ref, b_ref, o_ref, *, eps):
    x = x_ref[...].astype(jnp.float32)                   # (tile_rows, C)
    mean = jnp.mean(x, axis=-1, keepdims=True)
    xc = x - mean
    var = jnp.mean(xc * xc, axis=-1, keepdims=True)
    inv = lax.rsqrt(var + eps)
    y = xc * inv * w_ref[...] + b_ref[...]
    o_ref[...] = y.astype(o_ref.dtype)


def _row_tile(n_rows, row_width, elem, sublanes, num_tc):
    budget = max(sublanes,
                 (_TARGET_BLOCK_BYTES // (row_width * elem)) // sublanes * sublanes)
    if n_rows <= budget:
        # Only split a single-block problem when the chip actually has two
        # TensorCores to feed (v7x); on v5e/v6e this split is pure overhead.
        if num_tc >= 2 and n_rows > 2 * sublanes:
            half = _round_up(_ceil_div(n_rows, 2), sublanes)
            if half < n_rows:
                return half
        return n_rows
    return budget


def _layer_norm_rows(x2, weight, bias, eps):
    n, c = x2.shape
    elem = jnp.dtype(x2.dtype).itemsize
    tile_rows = _row_tile(n, c, elem, _sublane_multiple(x2.dtype),
                          _tensorcores_per_chip())
    return pl.pallas_call(
        functools.partial(_ln_rows_kernel, eps=eps),
        out_shape=jax.ShapeDtypeStruct((n, c), x2.dtype),
        grid=(_ceil_div(n, tile_rows),),                 # ragged tail via grid
        in_specs=[
            pl.BlockSpec((tile_rows, c), lambda i: (i, 0)),
            pl.BlockSpec((1, c), lambda i: (0, 0)),
            pl.BlockSpec((1, c), lambda i: (0, 0)),
        ],
        out_specs=pl.BlockSpec((tile_rows, c), lambda i: (i, 0)),
        compiler_params=_compiler_params(("parallel",)),
    )(x2, weight.reshape(1, c), bias.reshape(1, c))


# --------------------------------------------------------------------------- #
# channels_last, small C: lane-dense packed kernel, group-sum on the MXU.
# --------------------------------------------------------------------------- #
def _ln_packed_kernel(x_ref, gsum_ref, w_ref, b_ref, o_ref, *, eps):
    # x_ref: (tile_rows, g*c); each lane row holds g logical rows of width c.
    # gsum_ref: (g*c, g*c) block-diagonal matrix with 1/c in each c*c block.
    # x @ gsum = per-row group mean, broadcast to every lane of its group,
    # computed on the otherwise-idle MXU (keeps VPU/XLU free; kernel stays
    # HBM-bound on all generations).  1/c is exact (c is a power of two).
    x = x_ref[...].astype(jnp.float32)
    m = gsum_ref[...]
    mean = jnp.dot(x, m, preferred_element_type=jnp.float32)
    xc = x - mean
    var = jnp.dot(xc * xc, m, preferred_element_type=jnp.float32)
    inv = lax.rsqrt(var + eps)
    y = xc * inv * w_ref[...] + b_ref[...]
    o_ref[...] = y.astype(o_ref.dtype)


def _layer_norm_packed(x2, weight, bias, eps, g):
    n, c = x2.shape
    rows, gc = n // g, g * c
    xp = x2.reshape(rows, gc)                            # free reshape -> lane-dense slab
    elem = jnp.dtype(x2.dtype).itemsize
    tile_rows = _row_tile(rows, gc, elem, _sublane_multiple(x2.dtype),
                          _tensorcores_per_chip())
    lane = jnp.arange(gc, dtype=jnp.int32)
    gsum = jnp.where((lane[:, None] // c) == (lane[None, :] // c),
                     jnp.float32(1.0 / c), jnp.float32(0.0))
    out = pl.pallas_call(
        functools.partial(_ln_packed_kernel, eps=eps),
        out_shape=jax.ShapeDtypeStruct((rows, gc), x2.dtype),
        grid=(_ceil_div(rows, tile_rows),),
        in_specs=[
            pl.BlockSpec((tile_rows, gc), lambda i: (i, 0)),
            pl.BlockSpec((gc, gc), lambda i: (0, 0)),    # resident across grid
            pl.BlockSpec((1, gc), lambda i: (0, 0)),
            pl.BlockSpec((1, gc), lambda i: (0, 0)),
        ],
        out_specs=pl.BlockSpec((tile_rows, gc), lambda i: (i, 0)),
        compiler_params=_compiler_params(("parallel",)),
    )(xp, gsum,
      jnp.tile(weight, g).reshape(1, gc), jnp.tile(bias, g).reshape(1, gc))
    return out.reshape(n, c)


def _layer_norm_channels_last(x, weight, bias, eps):
    c = x.shape[-1]
    n = math.prod(x.shape[:-1])
    x2 = x.reshape(n, c)
    # Packed path only when it is truly lane-dense: C divides 128 AND the row
    # count divides the pack factor.  Otherwise use the plain row kernel
    # (correct for any C; lane-masked stores when C is small).
    g = 128 // c if (c < 128 and 128 % c == 0 and n % (128 // c) == 0) else 1
    out = (_layer_norm_packed(x2, weight, bias, eps, g) if g > 1
           else _layer_norm_rows(x2, weight, bias, eps))
    return out.reshape(x.shape)


# --------------------------------------------------------------------------- #
# Public API — matches networks/gconv.py::LayerNorm.forward semantics.
# --------------------------------------------------------------------------- #
def layer_norm(x, weight, bias, eps=1e-6, data_format="channels_last"):
    if data_format not in ("channels_last", "channels_first"):
        raise NotImplementedError
    weight = weight.astype(jnp.float32)   # affine params stay f32 end-to-end
    bias = bias.astype(jnp.float32)
    if data_format == "channels_first":
        return _layer_norm_channels_first(x, weight, bias, eps)
    return _layer_norm_channels_last(x, weight, bias, eps)


# --------------------------------------------------------------------------- #
# Pure-JAX references + smoke test.
# --------------------------------------------------------------------------- #
def _reference_channels_first(x, weight, bias, eps):
    u = jnp.mean(x, axis=1, keepdims=True)
    s = jnp.mean((x - u) ** 2, axis=1, keepdims=True)
    xn = (x - u) / jnp.sqrt(s + eps)
    return weight[None, :, None, None] * xn + bias[None, :, None, None]


def _reference_channels_last(x, weight, bias, eps):
    u = jnp.mean(x, axis=-1, keepdims=True)
    s = jnp.mean((x - u) ** 2, axis=-1, keepdims=True)
    xn = (x - u) / jnp.sqrt(s + eps)
    return weight * xn + bias


if __name__ == "__main__":
    key = jax.random.PRNGKey(0)
    k1, k2, k3, k4, k5, k6 = jax.random.split(key, 6)
    eps = 1e-6

    C = 4
    weight = 1.0 + 0.1 * jax.random.normal(k4, (C,), dtype=jnp.float32)
    bias = 0.1 * jax.random.normal(k5, (C,), dtype=jnp.float32)

    # channels_first (NCHW) — the conv layout used in gconv.py (no transposes).
    x_cf = jax.random.normal(k1, (2, C, 16, 16), dtype=jnp.float32)
    out_cf = jax.block_until_ready(
        layer_norm(x_cf, weight, bias, eps, data_format="channels_first"))
    ref_cf = _reference_channels_first(x_cf, weight, bias, eps)
    assert out_cf.shape == x_cf.shape
    assert jnp.allclose(out_cf, ref_cf, atol=1e-4, rtol=1e-4)

    # channels_last, small C, divisible rows -> packed lane-dense MXU kernel.
    x_cl = jax.random.normal(k2, (2, 16, 16, C), dtype=jnp.float32)
    out_cl = jax.block_until_ready(
        layer_norm(x_cl, weight, bias, eps, data_format="channels_last"))
    ref_cl = _reference_channels_last(x_cl, weight, bias, eps)
    assert out_cl.shape == x_cl.shape
    assert jnp.allclose(out_cl, ref_cl, atol=1e-4, rtol=1e-4)

    # channels_last, small C, rows not divisible by pack factor -> row kernel.
    x_odd = jax.random.normal(k6, (2, 5, 5, C), dtype=jnp.float32)
    out_odd = jax.block_until_ready(
        layer_norm(x_odd, weight, bias, eps, data_format="channels_last"))
    ref_odd = _reference_channels_last(x_odd, weight, bias, eps)
    assert out_odd.shape == x_odd.shape
    assert jnp.allclose(out_odd, ref_odd, atol=1e-4, rtol=1e-4)

    # channels_last, wide C -> plain row kernel.
    C2 = 256
    w2 = 1.0 + 0.1 * jax.random.normal(k4, (C2,), dtype=jnp.float32)
    b2 = 0.1 * jax.random.normal(k5, (C2,), dtype=jnp.float32)
    x_wide = jax.random.normal(k3, (2, 8, 8, C2), dtype=jnp.float32)
    out_wide = jax.block_until_ready(
        layer_norm(x_wide, w2, b2, eps, data_format="channels_last"))
    ref_wide = _reference_channels_last(x_wide, w2, b2, eps)
    assert out_wide.shape == x_wide.shape
    assert jnp.allclose(out_wide, ref_wide, atol=1e-4, rtol=1e-4)

    print("KERNEL_OK")
</pallas_src>

<mosaic_0001>
module attributes {stable_mosaic.version = 11 : i64} {
  func.func @_ln_channels_first_kernel(%arg0: i32, %arg1: i32, %arg2: memref<2x4x256xf32, #tpu.memory_space<vmem>>, %arg3: memref<4x1xf32, #tpu.memory_space<vmem>>, %arg4: memref<4x1xf32, #tpu.memory_space<vmem>>, %arg5: memref<2x4x256xf32, #tpu.memory_space<vmem>>) attributes {dimension_semantics = [#tpu.dimension_semantics<parallel>, #tpu.dimension_semantics<parallel>], iteration_bounds = array<i64: 1, 1>, scalar_prefetch = 0 : i64, scratch_operands = 0 : i64, tpu.core_type = #tpu.core_type<tc>, window_params = [{transform_indices = @transform_0, window_bounds = array<i64: 2, 4, 256>}, {pipeline_mode = #tpu.pipeline_mode<synchronous>, transform_indices = @transform_1, window_bounds = array<i64: 4, 1>}, {pipeline_mode = #tpu.pipeline_mode<synchronous>, transform_indices = @transform_2, window_bounds = array<i64: 4, 1>}, {transform_indices = @transform_3, window_bounds = array<i64: 2, 4, 256>}]} {
    %c0 = arith.constant 0 : index
    %c0_0 = arith.constant 0 : index
    %c0_1 = arith.constant 0 : index
    %0 = vector.load %arg2[%c0, %c0_0, %c0_1] : memref<2x4x256xf32, #tpu.memory_space<vmem>>, vector<2x4x256xf32>
    %cst = arith.constant dense<0.000000e+00> : vector<2x256xf32>
    %1 = vector.multi_reduction <add>, %0, %cst [1] : vector<2x4x256xf32> to vector<2x256xf32>
    %2 = vector.shape_cast %1 : vector<2x256xf32> to vector<2x1x256xf32>
    %cst_2 = arith.constant 4.000000e+00 : f32
    %3 = vector.broadcast %cst_2 : f32 to vector<2x1x256xf32>
    %4 = arith.divf %2, %3 : vector<2x1x256xf32>
    %5 = vector.broadcast %4 : vector<2x1x256xf32> to vector<2x4x256xf32>
    %6 = arith.subf %0, %5 : vector<2x4x256xf32>
    %7 = arith.mulf %6, %6 : vector<2x4x256xf32>
    %cst_3 = arith.constant dense<0.000000e+00> : vector<2x256xf32>
    %8 = vector.multi_reduction <add>, %7, %cst_3 [1] : vector<2x4x256xf32> to vector<2x256xf32>
    %9 = vector.shape_cast %8 : vector<2x256xf32> to vector<2x1x256xf32>
    %cst_4 = arith.constant 4.000000e+00 : f32
    %10 = vector.broadcast %cst_4 : f32 to vector<2x1x256xf32>
    %11 = arith.divf %9, %10 : vector<2x1x256xf32>
    %cst_5 = arith.constant 9.99999997E-7 : f32
    %12 = vector.broadcast %cst_5 : f32 to vector<2x1x256xf32>
    %13 = arith.addf %11, %12 : vector<2x1x256xf32>
    %14 = math.rsqrt %13 : vector<2x1x256xf32>
    %15 = vector.broadcast %14 : vector<2x1x256xf32> to vector<2x4x256xf32>
    %16 = arith.mulf %6, %15 : vector<2x4x256xf32>
    %c0_6 = arith.constant 0 : index
    %c0_7 = arith.constant 0 : index
    %17 = vector.load %arg3[%c0_6, %c0_7] : memref<4x1xf32, #tpu.memory_space<vmem>>, vector<4x1xf32>
    %18 = vector.shape_cast %17 : vector<4x1xf32> to vector<1x4x1xf32>
    %19 = vector.broadcast %18 : vector<1x4x1xf32> to vector<2x4x256xf32>
    %20 = arith.mulf %16, %19 : vector<2x4x256xf32>
    %c0_8 = arith.constant 0 : index
    %c0_9 = arith.constant 0 : index
    %21 = vector.load %arg4[%c0_8, %c0_9] : memref<4x1xf32, #tpu.memory_space<vmem>>, vector<4x1xf32>
    %22 = vector.shape_cast %21 : vector<4x1xf32> to vector<1x4x1xf32>
    %23 = vector.broadcast %22 : vector<1x4x1xf32> to vector<2x4x256xf32>
    %24 = arith.addf %20, %23 : vector<2x4x256xf32>
    %c0_10 = arith.constant 0 : index
    %c0_11 = arith.constant 0 : index
    %c0_12 = arith.constant 0 : index
    %25 = vector.load %arg5[%c0_10, %c0_11, %c0_12] : memref<2x4x256xf32, #tpu.memory_space<vmem>>, vector<2x4x256xf32>
    tpu.vector_store %arg5[%c0_10, %c0_11, %c0_12], %24 {strides = array<i32>} : memref<2x4x256xf32, #tpu.memory_space<vmem>>, vector<2x4x256xf32>,
    return
  }
  func.func @transform_0(%arg0: i32, %arg1: i32) -> (i32, i32, i32) {
    %c0_i32 = arith.constant 0 : i32
    %c0_i32_0 = arith.constant 0 : i32
    return %arg0, %c0_i32, %arg1 : i32, i32, i32
  }
  func.func @transform_1(%arg0: i32, %arg1: i32) -> (i32, i32) {
    %c0_i32 = arith.constant 0 : i32
    %c0_i32_0 = arith.constant 0 : i32
    %c0_i32_1 = arith.constant 0 : i32
    return %c0_i32, %c0_i32_0 : i32, i32
  }
  func.func @transform_2(%arg0: i32, %arg1: i32) -> (i32, i32) {
    %c0_i32 = arith.constant 0 : i32
    %c0_i32_0 = arith.constant 0 : i32
    %c0_i32_1 = arith.constant 0 : i32
    return %c0_i32, %c0_i32_0 : i32, i32
  }
  func.func @transform_3(%arg0: i32, %arg1: i32) -> (i32, i32, i32) {
    %c0_i32 = arith.constant 0 : i32
    %c0_i32_0 = arith.constant 0 : i32
    return %arg0, %c0_i32, %arg1 : i32, i32, i32
  }
}

</mosaic_0001>

<llo_original>
// kernel: tpu_custom_call.1
$region0: #{tpu_custom_call.1}
  #allocation0 [shape = 'u32[]', space=smem, size = 0x4, offset = 0x4, fixed_abs, tag = 'smem constant byte address 0x4 - core index']
  #allocation1 [shape = 'u32[144,128]{1,0:T(1,128)}', space=vmem, size = 0x12000, scoped, tag = 'internal scratch']
  %s0 = inlined_call_operand.hbm [shape: f32[2,4,256], index: 0, kind: input, shape index: {}]
  %s1 = inlined_call_operand.vmem [shape: f32[4,1], index: 1, kind: input, shape index: {}]
  %s2 = inlined_call_operand.vmem [shape: f32[4,1], index: 2, kind: input, shape index: {}]
  %s3 = inlined_call_operand.hbm [shape: f32[2,4,256], index: 3, kind: output, shape index: {}]
  %s4 = sld [smem:[#allocation0]]
  $region26: #{tpu_custom_call.1} parent=0
    _
  %s6 = ssub.s32 1, %s4
  %s7 = scalar_select 0, %s6, %s4
  $region1: #{tpu_custom_call.1} parent=0
    #allocation2 [shape = 'u8[8192]{0}', space=vmem, size = 0x2000, scoped, tag = 'input window, operand 0, single buffered']
    #allocation3 [shape = 's32[1]{0}', space=sflag, size = 0x4, scoped, tag = 'scoped memory for tpu_custom_call.1']
    #allocation4 [shape = 's32[1]{0}', space=sflag, size = 0x4, scoped, tag = 'scoped memory for tpu_custom_call.1']
    #allocation5 [shape = 'u8[8192]{0}', space=vmem, size = 0x2000, scoped, tag = 'output window, operand 0, single buffered']
    %8 = vsyncpa [#allocation3], 0
    %9 = vsyncpa [#allocation4], 0
    // Predicated region
    $region2: #{tpu_custom_call.1} parent=1 // pred_check
      _
    $region3: #{tpu_custom_call.1} parent=1 // pred_check_branch
      %11 = sbr.rel (0) target = $region5
    $region4: #{tpu_custom_call.1} parent=1 // pred_region
      %s13 = ssub.s32 256, 256
      %14 = vsyncadd [#allocation3], %s13
      %s15 = sshll.u32 [#allocation2], 4
      %s16 = int_to_ptr.vmem [resolvable:$true] %s15
      %21 = dma.hbm_to_vmem [thread:$0]  %s0, 256, %s16, [#allocation3], 128, 128, 8
    $region5: #{tpu_custom_call.1} parent=1 // pred_fallthru
      _
    // Predicated region
    $region6: #{tpu_custom_call.1} parent=1 // pred_check
      _
    $region7: #{tpu_custom_call.1} parent=1 // pred_check_branch
      %23 = sbr.rel (0) target = $region9
    $region8: #{tpu_custom_call.1} parent=1 // pred_region
      _
    $region9: #{tpu_custom_call.1} parent=1 // pred_fallthru
      _
    // Predicated region
    $region10: #{tpu_custom_call.1} parent=1 // pred_check
      _
    $region11: #{tpu_custom_call.1} parent=1 // pred_check_branch
      %25 = sbr.rel (0) target = $region13
    $region12: #{tpu_custom_call.1} parent=1 // pred_region
      _
    $region13: #{tpu_custom_call.1} parent=1 // pred_fallthru
      _
    // Predicated region
    $region14: #{tpu_custom_call.1} parent=1 // pred_check
      _
    $region15: #{tpu_custom_call.1} parent=1 // pred_check_branch
      %27 = sbr.rel (0) target = $region17
    $region16: #{tpu_custom_call.1} parent=1 // pred_region
      %28 = dma.done [#allocation3], 256
    $region17: #{tpu_custom_call.1} parent=1 // pred_fallthru
      _
    %v29 = vld [vmem:[#allocation2] sm:$0xff]
    %v30 = vld [vmem:[#allocation2 + $0x8] sm:$0xff]
    %v33 = vcombine.high %v29, %v29
    %v34 = vcombine.high %v30, %v30
    %vm37 = vcmask 1043456
    %v38 = vsel %vm37, %v29, 0.0
    %v39 = vrot.slane %v38, 4
    %v40 = vadd.f32 %v38, %v39
    %v41 = vrot.slane %v40, 2
    %v42 = vadd.f32 %v40, %v41
    %v43 = vrot.slane %v42, 1
    %v44 = vadd.f32 %v42, %v43
    %v45 = vsel %vm37, %v33, 0.0
    %v46 = vrot.slane %v45, 4
    %v47 = vadd.f32 %v45, %v46
    %v48 = vrot.slane %v47, 2
    %v49 = vadd.f32 %v47, %v48
    %v50 = vrot.slane %v49, 1
    %v51 = vadd.f32 %v49, %v50
    %v52 = vsel %vm37, %v30, 0.0
    %v53 = vrot.slane %v52, 4
    %v54 = vadd.f32 %v52, %v53
    %v55 = vrot.slane %v54, 2
    %v56 = vadd.f32 %v54, %v55
    %v57 = vrot.slane %v56, 1
    %v58 = vadd.f32 %v56, %v57
    %v59 = vsel %vm37, %v34, 0.0
    %v60 = vrot.slane %v59, 4
    %v61 = vadd.f32 %v59, %v60
    %v62 = vrot.slane %v61, 2
    %v63 = vadd.f32 %v61, %v62
    %v64 = vrot.slane %v63, 1
    %v65 = vadd.f32 %v63, %v64
    %v66 = vrcp.pop 4.0
    %v67 = vmul.f32 %v44, %v66
    %v68 = vmul.f32 %v51, %v66
    %v69 = vmul.f32 %v58, %v66
    %v70 = vmul.f32 %v65, %v66
    %v75 = vcombine.low %v67, %v68
    %v76 = vcombine.low %v69, %v70
    %v79 = vsub.f32 %v29, %v75
    %v80 = vsub.f32 %v30, %v76
    %v81 = vmul.f32 %v79, %v79
    %v82 = vmul.f32 %v80, %v80
    %v85 = vcombine.high %v81, %v81
    %v86 = vcombine.high %v82, %v82
    %v89 = vsel %vm37, %v81, 0.0
    %v90 = vrot.slane %v89, 4
    %v91 = vadd.f32 %v89, %v90
    %v92 = vrot.slane %v91, 2
    %v93 = vadd.f32 %v91, %v92
    %v94 = vrot.slane %v93, 1
    %v95 = vadd.f32 %v93, %v94
    %v96 = vsel %vm37, %v85, 0.0
    %v97 = vrot.slane %v96, 4
    %v98 = vadd.f32 %v96, %v97
    %v99 = vrot.slane %v98, 2
    %v100 = vadd.f32 %v98, %v99
    %v101 = vrot.slane %v100, 1
    %v102 = vadd.f32 %v100, %v101
    %v103 = vsel %vm37, %v82, 0.0
    %v104 = vrot.slane %v103, 4
    %v105 = vadd.f32 %v103, %v104
    %v106 = vrot.slane %v105, 2
    %v107 = vadd.f32 %v105, %v106
    %v108 = vrot.slane %v107, 1
    %v109 = vadd.f32 %v107, %v108
    %v110 = vsel %vm37, %v86, 0.0
    %v111 = vrot.slane %v110, 4
    %v112 = vadd.f32 %v110, %v111
    %v113 = vrot.slane %v112, 2
    %v114 = vadd.f32 %v112, %v113
    %v115 = vrot.slane %v114, 1
    %v116 = vadd.f32 %v114, %v115
    %v117 = vmul.f32 %v95, %v66
    %v118 = vmul.f32 %v102, %v66
    %v119 = vmul.f32 %v109, %v66
    %v120 = vmul.f32 %v116, %v66
    %v121 = vadd.f32 %v117, 1e-06
    %v122 = vadd.f32 %v118, 1e-06
    %v123 = vadd.f32 %v119, 1e-06
    %v124 = vadd.f32 %v120, 1e-06
    %v125 = vrsqrt.pop %v121
    %v126 = vrsqrt.pop %v122
    %v127 = vrsqrt.pop %v123
    %v128 = vrsqrt.pop %v124
    %v133 = vcombine.low %v125, %v126
    %v134 = vcombine.low %v127, %v128
    %v137 = vmul.f32 %v79, %v133
    %v138 = vmul.f32 %v80, %v134
    %v139 = vld [vmem:[%s1] sm:$0xf]
    %141 = vset.pattern.permute.xlu0 0
    %142 = vperm.xlu0 %141, %v139
    %v143 = vpop.permute.xlu0 %142
    %v145 = vunpack.c.l.s4 839922192
    %v146 = vunpack.c.0.s8 %v145
    %v147 = vlaneseq
    %v148 = vshrl.u32 %v147, 7
    %v149 = vsub.s32 %v146, %v148
    %v150 = vrot.slane %v143, %v149
    %v152 = vmul.f32 %v137, %v150
    %v153 = vmul.f32 %v138, %v150
    %v154 = vld [vmem:[%s2] sm:$0xf]
    %156 = vset.pattern.permute.xlu0 0
    %157 = vperm.xlu0 %156, %v154
    %v158 = vpop.permute.xlu0 %157
    %v160 = vunpack.c.l.s4 839922192
    %v161 = vunpack.c.0.s8 %v160
    %v162 = vlaneseq
    %v163 = vshrl.u32 %v162, 7
    %v164 = vsub.s32 %v161, %v163
    %v165 = vrot.slane %v158, %v164
    %v167 = vadd.f32 %v152, %v165
    %v168 = vadd.f32 %v153, %v165
    %169 = vst [vmem:[#allocation5] sm:$0xff] %v167
    %170 = vst [vmem:[#allocation5 + $0x8] sm:$0xff] %v168
    // Predicated region
    $region18: #{tpu_custom_call.1} parent=1 // pred_check
      _
    $region19: #{tpu_custom_call.1} parent=1 // pred_check_branch
      %172 = sbr.rel (0) target = $region21
    $region20: #{tpu_custom_call.1} parent=1 // pred_region
      %s174 = ssub.s32 256, 256
      %175 = vsyncadd [#allocation4], %s174
      %s176 = sshll.u32 [#allocation5], 4
      %s177 = int_to_ptr.vmem [resolvable:$true] %s176
      %182 = dma.vmem_to_hbm [thread:$0]  %s177, 256, %s3, [#allocation4], 128, 128, 8
    $region21: #{tpu_custom_call.1} parent=1 // pred_fallthru
      _
    // Predicated region
    $region22: #{tpu_custom_call.1} parent=1 // pred_check
      _
    $region23: #{tpu_custom_call.1} parent=1 // pred_check_branch
      %184 = sbr.rel (0) target = $region25
    $region24: #{tpu_custom_call.1} parent=1 // pred_region
      %185 = dma.done [#allocation4], 256
    $region25: #{tpu_custom_call.1} parent=1 // pred_fallthru
      _
    %186 = vsyncpa [#allocation3], 1
    %187 = vsyncpa [#allocation4], 1

</llo_original>
